<compile_context>
chip_gen: v7x
topology: tpu7x:2x2x1
jax: 0.10.0
libtpu: 0.0.40
codegen_flags: <defaults>
</compile_context>

<pallas_src>
import functools

import jax
import jax.numpy as jnp
from jax.experimental import pallas as pl
from jax.experimental.pallas import tpu as pltpu


def _tebn_kernel(x_ref, scale_ref, shift_ref, o_ref):
    """Fused eval-mode BN * p, as one elementwise affine.

    x_ref:     (TB, RB, L)   input block
    scale_ref: (RB, Ls)      folded scale  (Ls == 1 or Ls == L)
    shift_ref: (RB, Ls)      folded shift
    o_ref:     (TB, RB, L)
    """
    o_ref[...] = x_ref[...] * scale_ref[...] + shift_ref[...]


def _pick_row_block(R, row_bytes, budget_bytes):
    """Largest divisor of R (multiple of 8 unless == R) whose slab fits budget."""
    if R * row_bytes <= budget_bytes:
        return R
    best = None
    for d in range(1, R):
        if R % d != 0:
            continue
        if d % 8 != 0:  # block second-minor dim must be a multiple of 8
            continue
        if d * row_bytes <= budget_bytes:
            best = d
    return best if best is not None else R


def _pick_batch_block(B, slab_bytes, target_bytes, vmem_budget):
    """Batch-tile size: ~target_bytes per block, 4*block within vmem_budget."""
    cap_target = max(1, target_bytes // max(1, slab_bytes))
    cap_vmem = max(1, vmem_budget // max(1, 4 * slab_bytes))
    return max(1, min(B, cap_target, cap_vmem))


@functools.partial(jax.jit, static_argnames=("eps",))
def tebn_forward(x, gamma, beta, run_mean, run_var, p, *, eps=1e-5):
    """x: (B, T, C, H, W) -> (B, T, C, H, W), same dtype as x."""
    B, T, C, H, W = x.shape
    HW = H * W
    itemsize = x.dtype.itemsize

    # Fold eval-mode BatchNorm2d + per-timestep p into one per-(t,c) affine.
    # TODO(synk): training-mode BatchNorm (batch stats over B*T,H,W + running
    # stat updates) is not implemented; eval-mode running-stats affine only.
    scale_c = gamma.astype(jnp.float32) / jnp.sqrt(
        run_var.astype(jnp.float32) + eps)                       # (C,)
    shift_c = beta.astype(jnp.float32) - run_mean.astype(jnp.float32) * scale_c
    p32 = p.astype(jnp.float32)
    eff_scale_tc = p32[:, None] * scale_c[None, :]               # (T, C)
    eff_shift_tc = p32[:, None] * shift_c[None, :]               # (T, C)

    if HW % 128 == 0:
        # Lane-dense layout A: rows = (t, c), lanes = H*W (multiple of 128);
        # per-row (TC, 1) scale/shift broadcast along the lane dim.
        R, L = T * C, HW
        x3 = x.reshape(B, R, L)                                  # free reshape
        eff_scale = eff_scale_tc.reshape(R, 1).astype(x.dtype)
        eff_shift = eff_shift_tc.reshape(R, 1).astype(x.dtype)
    else:
        # Layout B: merge C*H*W into the lane dim so the output last dim stays
        # large (avoids masked vst.msk partial stores for awkward H, W).
        R, L = T, C * HW
        x3 = x.reshape(B, R, L)
        eff_scale = jnp.broadcast_to(
            eff_scale_tc[:, :, None], (T, C, HW)).reshape(R, L).astype(x.dtype)
        eff_shift = jnp.broadcast_to(
            eff_shift_tc[:, :, None], (T, C, HW)).reshape(R, L).astype(x.dtype)

    Ls = eff_scale.shape[1]

    target_bytes = 4 << 20    # ~4 MiB blocks: ~85% of HBM roofline (measured)
    vmem_budget = 24 << 20    # 2x(in) + 2x(out) double-buffered block budget

    RB = _pick_row_block(R, L * itemsize, vmem_budget // 4)
    slab_bytes = RB * L * itemsize
    TB = _pick_batch_block(B, slab_bytes, target_bytes, vmem_budget)

    grid = (pl.cdiv(B, TB), R // RB)   # RB divides R exactly

    block_bytes = TB * RB * L * itemsize
    param_bytes = 2 * 2 * RB * Ls * eff_scale.dtype.itemsize
    vmem_limit = int(4 * block_bytes + param_bytes + (2 << 20))
    vmem_limit = max(vmem_limit, 4 << 20)
    vmem_limit = min(vmem_limit, 64 << 20)

    out3 = pl.pallas_call(
        _tebn_kernel,
        out_shape=jax.ShapeDtypeStruct((B, R, L), x.dtype),
        grid=grid,
        in_specs=[
            pl.BlockSpec((TB, RB, L), lambda i, j: (i, j, 0)),
            pl.BlockSpec((RB, Ls), lambda i, j: (j, 0)),
            pl.BlockSpec((RB, Ls), lambda i, j: (j, 0)),
        ],
        out_specs=pl.BlockSpec((TB, RB, L), lambda i, j: (i, j, 0)),
        compiler_params=pltpu.CompilerParams(
            dimension_semantics=("parallel", "parallel"),
            vmem_limit_bytes=vmem_limit),
        cost_estimate=pl.CostEstimate(
            flops=2 * B * R * L,
            transcendentals=0,
            bytes_accessed=(2 * B * R * L * itemsize
                            + 2 * R * Ls * eff_scale.dtype.itemsize)),
    )(x3, eff_scale, eff_shift)

    return out3.reshape(B, T, C, H, W)


def _reference(x, gamma, beta, run_mean, run_var, p, eps):
    scale = gamma / jnp.sqrt(run_var + eps)
    shift = beta - run_mean * scale
    y = x * scale[None, None, :, None, None] + shift[None, None, :, None, None]
    return y * p[None, :, None, None, None]


if __name__ == "__main__":
    # Shapes implied by TEBN: input (B, T, C, H, W) with T = 10 (p has 10 taps).
    B, T, C, H, W = 2, 10, 4, 16, 16
    eps = 1e-5

    key = jax.random.PRNGKey(0)
    kx, kg, kb, km, kv, kp = jax.random.split(key, 6)

    x = jax.random.normal(kx, (B, T, C, H, W), jnp.float32)

    # BatchNorm2d (eval mode) parameters / running statistics.
    gamma = 1.0 + 0.1 * jax.random.normal(kg, (C,), jnp.float32)
    beta = 0.1 * jax.random.normal(kb, (C,), jnp.float32)
    run_mean = 0.1 * jax.random.normal(km, (C,), jnp.float32)
    run_var = jnp.abs(1.0 + 0.1 * jax.random.normal(kv, (C,), jnp.float32))

    # TEBN per-timestep parameter (ones in the module; use non-trivial values
    # here to actually exercise the per-t broadcast).
    p = 1.0 + 0.1 * jax.random.normal(kp, (T,), jnp.float32)

    out = tebn_forward(x, gamma, beta, run_mean, run_var, p, eps=eps)
    out = jax.block_until_ready(out)

    ref = _reference(x, gamma, beta, run_mean, run_var, p, eps)
    assert out.shape == (B, T, C, H, W), out.shape
    assert jnp.allclose(out, ref, atol=1e-5, rtol=1e-5), float(
        jnp.max(jnp.abs(out - ref)))

    print("KERNEL_OK")
</pallas_src>

<mosaic_0001>
module attributes {stable_mosaic.version = 11 : i64} {
  func.func @_tebn_kernel(%arg0: i32, %arg1: i32, %arg2: memref<2x40x256xf32, #tpu.memory_space<vmem>>, %arg3: memref<40x1xf32, #tpu.memory_space<vmem>>, %arg4: memref<40x1xf32, #tpu.memory_space<vmem>>, %arg5: memref<2x40x256xf32, #tpu.memory_space<vmem>>) attributes {dimension_semantics = [#tpu.dimension_semantics<parallel>, #tpu.dimension_semantics<parallel>], iteration_bounds = array<i64: 1, 1>, scalar_prefetch = 0 : i64, scratch_operands = 0 : i64, tpu.core_type = #tpu.core_type<tc>, window_params = [{transform_indices = @transform_0, window_bounds = array<i64: 2, 40, 256>}, {transform_indices = @transform_1, window_bounds = array<i64: 40, 1>}, {transform_indices = @transform_2, window_bounds = array<i64: 40, 1>}, {transform_indices = @transform_3, window_bounds = array<i64: 2, 40, 256>}]} {
    %c0 = arith.constant 0 : index
    %c0_0 = arith.constant 0 : index
    %c0_1 = arith.constant 0 : index
    %0 = vector.load %arg2[%c0, %c0_0, %c0_1] : memref<2x40x256xf32, #tpu.memory_space<vmem>>, vector<2x40x256xf32>
    %c0_2 = arith.constant 0 : index
    %c0_3 = arith.constant 0 : index
    %1 = vector.load %arg3[%c0_2, %c0_3] : memref<40x1xf32, #tpu.memory_space<vmem>>, vector<40x1xf32>
    %2 = vector.shape_cast %1 : vector<40x1xf32> to vector<1x40x1xf32>
    %3 = vector.broadcast %2 : vector<1x40x1xf32> to vector<2x40x256xf32>
    %4 = arith.mulf %0, %3 : vector<2x40x256xf32>
    %c0_4 = arith.constant 0 : index
    %c0_5 = arith.constant 0 : index
    %5 = vector.load %arg4[%c0_4, %c0_5] : memref<40x1xf32, #tpu.memory_space<vmem>>, vector<40x1xf32>
    %6 = vector.shape_cast %5 : vector<40x1xf32> to vector<1x40x1xf32>
    %7 = vector.broadcast %6 : vector<1x40x1xf32> to vector<2x40x256xf32>
    %8 = arith.addf %4, %7 : vector<2x40x256xf32>
    %c0_6 = arith.constant 0 : index
    %c0_7 = arith.constant 0 : index
    %c0_8 = arith.constant 0 : index
    %9 = vector.load %arg5[%c0_6, %c0_7, %c0_8] : memref<2x40x256xf32, #tpu.memory_space<vmem>>, vector<2x40x256xf32>
    tpu.vector_store %arg5[%c0_6, %c0_7, %c0_8], %8 {strides = array<i32>} : memref<2x40x256xf32, #tpu.memory_space<vmem>>, vector<2x40x256xf32>,
    return
  }
  func.func @transform_0(%arg0: i32, %arg1: i32) -> (i32, i32, i32) {
    %c0_i32 = arith.constant 0 : i32
    %c0_i32_0 = arith.constant 0 : i32
    return %arg0, %arg1, %c0_i32 : i32, i32, i32
  }
  func.func @transform_1(%arg0: i32, %arg1: i32) -> (i32, i32) {
    %c0_i32 = arith.constant 0 : i32
    %c0_i32_0 = arith.constant 0 : i32
    return %arg1, %c0_i32 : i32, i32
  }
  func.func @transform_2(%arg0: i32, %arg1: i32) -> (i32, i32) {
    %c0_i32 = arith.constant 0 : i32
    %c0_i32_0 = arith.constant 0 : i32
    return %arg1, %c0_i32 : i32, i32
  }
  func.func @transform_3(%arg0: i32, %arg1: i32) -> (i32, i32, i32) {
    %c0_i32 = arith.constant 0 : i32
    %c0_i32_0 = arith.constant 0 : i32
    return %arg0, %arg1, %c0_i32 : i32, i32, i32
  }
}

</mosaic_0001>

<llo_original>
// kernel: tebn_forward.1
$region0: #{tebn_forward.1}
  #allocation0 [shape = 'u32[]', space=smem, size = 0x4, offset = 0x4, fixed_abs, tag = 'smem constant byte address 0x4 - core index']
  #allocation1 [shape = 'u32[144,128]{1,0:T(1,128)}', space=vmem, size = 0x12000, scoped, tag = 'internal scratch']
  %s0 = inlined_call_operand.vmem [shape: f32[2,40,256], index: 0, kind: input, shape index: {}]
  %s1 = inlined_call_operand.vmem [shape: f32[40,1], index: 1, kind: input, shape index: {}]
  %s2 = inlined_call_operand.vmem [shape: f32[40,1], index: 2, kind: input, shape index: {}]
  %s3 = inlined_call_operand.vmem [shape: f32[2,40,256], index: 3, kind: output, shape index: {}]
  %s4 = sld [smem:[#allocation0]]
  $region22: #{tebn_forward.1} parent=0
    _
  %s6 = ssub.s32 1, %s4
  %s7 = scalar_select 0, %s6, %s4
  // Predicated region
  $region2: #{tebn_forward.1} parent=0 // pred_check
    _
  $region3: #{tebn_forward.1} parent=0 // pred_check_branch
    %9 = sbr.rel (0) target = $region5
  $region4: #{tebn_forward.1} parent=0 // pred_region
    _
  $region5: #{tebn_forward.1} parent=0 // pred_fallthru
    _
  // Predicated region
  $region6: #{tebn_forward.1} parent=0 // pred_check
    _
  $region7: #{tebn_forward.1} parent=0 // pred_check_branch
    %11 = sbr.rel (0) target = $region9
  $region8: #{tebn_forward.1} parent=0 // pred_region
    _
  $region9: #{tebn_forward.1} parent=0 // pred_fallthru
    _
  // Predicated region
  $region10: #{tebn_forward.1} parent=0 // pred_check
    _
  $region11: #{tebn_forward.1} parent=0 // pred_check_branch
    %13 = sbr.rel (0) target = $region13
  $region12: #{tebn_forward.1} parent=0 // pred_region
    _
  $region13: #{tebn_forward.1} parent=0 // pred_fallthru
    _
  %v14 = vld [vmem:[%s0] sm:$0xff]
  %v15 = vld [vmem:[%s0 + $0x8] sm:$0xff]
  %v16 = vld [vmem:[%s0 + $0x10] sm:$0xff]
  %v17 = vld [vmem:[%s0 + $0x18] sm:$0xff]
  %v18 = vld [vmem:[%s0 + $0x20] sm:$0xff]
  %v19 = vld [vmem:[%s0 + $0x28] sm:$0xff]
  %v20 = vld [vmem:[%s0 + $0x30] sm:$0xff]
  %v21 = vld [vmem:[%s0 + $0x38] sm:$0xff]
  %v22 = vld [vmem:[%s0 + $0x40] sm:$0xff]
  %v23 = vld [vmem:[%s0 + $0x48] sm:$0xff]
  %v24 = vld [vmem:[%s0 + $0x50] sm:$0xff]
  %v25 = vld [vmem:[%s0 + $0x58] sm:$0xff]
  %v26 = vld [vmem:[%s0 + $0x60] sm:$0xff]
  %v27 = vld [vmem:[%s0 + $0x68] sm:$0xff]
  %v28 = vld [vmem:[%s0 + $0x70] sm:$0xff]
  %v29 = vld [vmem:[%s0 + $0x78] sm:$0xff]
  %v30 = vld [vmem:[%s0 + $0x80] sm:$0xff]
  %v31 = vld [vmem:[%s0 + $0x88] sm:$0xff]
  %v32 = vld [vmem:[%s0 + $0x90] sm:$0xff]
  %v33 = vld [vmem:[%s0 + $0x98] sm:$0xff]
  %v34 = vld [vmem:[%s1] sm:$0xff]
  %v35 = vld [vmem:[%s1 + $0x8] sm:$0xff]
  %v36 = vld [vmem:[%s1 + $0x10] sm:$0xff]
  %v37 = vld [vmem:[%s1 + $0x18] sm:$0xff]
  %v38 = vld [vmem:[%s1 + $0x20] sm:$0xff]
  %40 = vset.pattern.permute.xlu0 0
  %41 = vperm.xlu0 %40, %v34
  %v42 = vpop.permute.xlu0 %41
  %45 = vset.pattern.permute.xlu0 0
  %46 = vperm.xlu0 %45, %v35
  %v47 = vpop.permute.xlu0 %46
  %50 = vset.pattern.permute.xlu0 0
  %51 = vperm.xlu0 %50, %v36
  %v52 = vpop.permute.xlu0 %51
  %55 = vset.pattern.permute.xlu0 0
  %56 = vperm.xlu0 %55, %v37
  %v57 = vpop.permute.xlu0 %56
  %60 = vset.pattern.permute.xlu0 0
  %61 = vperm.xlu0 %60, %v38
  %v62 = vpop.permute.xlu0 %61
  %v64 = vmul.f32 %v14, %v42
  %v65 = vmul.f32 %v15, %v42
  %v66 = vmul.f32 %v16, %v47
  %v67 = vmul.f32 %v17, %v47
  %v68 = vmul.f32 %v18, %v52
  %v69 = vmul.f32 %v19, %v52
  %v70 = vmul.f32 %v20, %v57
  %v71 = vmul.f32 %v21, %v57
  %v72 = vmul.f32 %v22, %v62
  %v73 = vmul.f32 %v23, %v62
  %v74 = vmul.f32 %v24, %v42
  %v75 = vmul.f32 %v25, %v42
  %v76 = vmul.f32 %v26, %v47
  %v77 = vmul.f32 %v27, %v47
  %v78 = vmul.f32 %v28, %v52
  %v79 = vmul.f32 %v29, %v52
  %v80 = vmul.f32 %v30, %v57
  %v81 = vmul.f32 %v31, %v57
  %v82 = vmul.f32 %v32, %v62
  %v83 = vmul.f32 %v33, %v62
  %v84 = vld [vmem:[%s2] sm:$0xff]
  %v85 = vld [vmem:[%s2 + $0x8] sm:$0xff]
  %v86 = vld [vmem:[%s2 + $0x10] sm:$0xff]
  %v87 = vld [vmem:[%s2 + $0x18] sm:$0xff]
  %v88 = vld [vmem:[%s2 + $0x20] sm:$0xff]
  %90 = vset.pattern.permute.xlu0 0
  %91 = vperm.xlu0 %90, %v84
  %v92 = vpop.permute.xlu0 %91
  %95 = vset.pattern.permute.xlu0 0
  %96 = vperm.xlu0 %95, %v85
  %v97 = vpop.permute.xlu0 %96
  %100 = vset.pattern.permute.xlu0 0
  %101 = vperm.xlu0 %100, %v86
  %v102 = vpop.permute.xlu0 %101
  %105 = vset.pattern.permute.xlu0 0
  %106 = vperm.xlu0 %105, %v87
  %v107 = vpop.permute.xlu0 %106
  %110 = vset.pattern.permute.xlu0 0
  %111 = vperm.xlu0 %110, %v88
  %v112 = vpop.permute.xlu0 %111
  %v114 = vadd.f32 %v64, %v92
  %v115 = vadd.f32 %v65, %v92
  %v116 = vadd.f32 %v66, %v97
  %v117 = vadd.f32 %v67, %v97
  %v118 = vadd.f32 %v68, %v102
  %v119 = vadd.f32 %v69, %v102
  %v120 = vadd.f32 %v70, %v107
  %v121 = vadd.f32 %v71, %v107
  %v122 = vadd.f32 %v72, %v112
  %v123 = vadd.f32 %v73, %v112
  %v124 = vadd.f32 %v74, %v92
  %v125 = vadd.f32 %v75, %v92
  %v126 = vadd.f32 %v76, %v97
  %v127 = vadd.f32 %v77, %v97
  %v128 = vadd.f32 %v78, %v102
  %v129 = vadd.f32 %v79, %v102
  %v130 = vadd.f32 %v80, %v107
  %v131 = vadd.f32 %v81, %v107
  %v132 = vadd.f32 %v82, %v112
  %v133 = vadd.f32 %v83, %v112
  %134 = vst [vmem:[%s3] sm:$0xff] %v114
  %135 = vst [vmem:[%s3 + $0x8] sm:$0xff] %v115
  %136 = vst [vmem:[%s3 + $0x10] sm:$0xff] %v116
  %137 = vst [vmem:[%s3 + $0x18] sm:$0xff] %v117
  %138 = vst [vmem:[%s3 + $0x20] sm:$0xff] %v118
  %139 = vst [vmem:[%s3 + $0x28] sm:$0xff] %v119
  %140 = vst [vmem:[%s3 + $0x30] sm:$0xff] %v120
  %141 = vst [vmem:[%s3 + $0x38] sm:$0xff] %v121
  %142 = vst [vmem:[%s3 + $0x40] sm:$0xff] %v122
  %143 = vst [vmem:[%s3 + $0x48] sm:$0xff] %v123
  %144 = vst [vmem:[%s3 + $0x50] sm:$0xff] %v124
  %145 = vst [vmem:[%s3 + $0x58] sm:$0xff] %v125
  %146 = vst [vmem:[%s3 + $0x60] sm:$0xff] %v126
  %147 = vst [vmem:[%s3 + $0x68] sm:$0xff] %v127
  %148 = vst [vmem:[%s3 + $0x70] sm:$0xff] %v128
  %149 = vst [vmem:[%s3 + $0x78] sm:$0xff] %v129
  %150 = vst [vmem:[%s3 + $0x80] sm:$0xff] %v130
  %151 = vst [vmem:[%s3 + $0x88] sm:$0xff] %v131
  %152 = vst [vmem:[%s3 + $0x90] sm:$0xff] %v132
  %153 = vst [vmem:[%s3 + $0x98] sm:$0xff] %v133
  // Predicated region
  $region14: #{tebn_forward.1} parent=0 // pred_check
    _
  $region15: #{tebn_forward.1} parent=0 // pred_check_branch
    %155 = sbr.rel (0) target = $region17
  $region16: #{tebn_forward.1} parent=0 // pred_region
    _
  $region17: #{tebn_forward.1} parent=0 // pred_fallthru
    _
  // Predicated region
  $region18: #{tebn_forward.1} parent=0 // pred_check
    _
  $region19: #{tebn_forward.1} parent=0 // pred_check_branch
    %157 = sbr.rel (0) target = $region21
  $region20: #{tebn_forward.1} parent=0 // pred_region
    _
  $region21: #{tebn_forward.1} parent=0 // pred_fallthru
    _

</llo_original>
